<compile_context>
chip_gen: v5e
topology: v5e:2x2
jax: 0.10.0
libtpu: 0.0.40
codegen_flags: <defaults>
</compile_context>

<pallas_src>
import math

import jax
import jax.numpy as jnp
from jax.experimental import pallas as pl
from jax.experimental.pallas import tpu as pltpu


def qnetwork_kernel(x_ref, w1_ref, b1_ref, w2_ref, b2_ref, w3_ref, b3_ref,
                    o_ref):
    """Fused packed-MLP forward: lane-dense operands, plain NN matmuls."""
    x = x_ref[...]                                         # (tile_p, P*S)
    h = jnp.dot(x, w1_ref[...], preferred_element_type=jnp.float32)
    h = jnp.maximum(h + b1_ref[...], 0.0)                  # (tile_p, P*20)
    h = jnp.dot(h, w2_ref[...], preferred_element_type=jnp.float32)
    h = jnp.maximum(h + b2_ref[...], 0.0)                  # (tile_p, P*8)
    y = jnp.dot(h, w3_ref[...], preferred_element_type=jnp.float32)
    o_ref[...] = (y + b3_ref[...]).astype(o_ref.dtype)     # (tile_p, P*A)


def _round_up(n, m):
    return ((n + m - 1) // m) * m


def _block_diag_pack(w, pack):
    """PyTorch-layout (out, in) weight -> (pack*in, pack*out) block-diag RHS.

    result[i*in + s, j*out + o] = (i == j) * w[o, s], so
    x_packed @ result computes x @ w.T independently for each of the `pack`
    rows packed into one lane-row.
    """
    out_f, in_f = w.shape
    eye = jnp.eye(pack, dtype=w.dtype)
    wp = jnp.einsum("ij,os->isjo", eye, w)                 # (p, in, p, out)
    return wp.reshape(pack * in_f, pack * out_f)


def pack_qnetwork_params(params, state_size):
    """One-time weight re-layout for the packed-lane formulation."""
    pack = 128 // math.gcd(state_size, 128)   # 32 for state_size=4
    packed = {}
    for n in (1, 2, 3):
        w = params[f"w{n}"]
        b = params[f"b{n}"].reshape(-1)
        packed[f"w{n}"] = _block_diag_pack(w, pack)
        packed[f"b{n}"] = jnp.tile(b, pack).reshape(1, -1)
    return packed


@jax.jit
def qnetwork_forward(x, packed):
    """Fused QNetwork forward.

    x: (B, state_size) float32
    packed: output of pack_qnetwork_params (block-diagonal weights + tiled
            biases, PyTorch math preserved).
    Returns (B, action_size) float32.
    """
    B, S = x.shape
    w1p, b1p = packed["w1"], packed["b1"]
    w2p, b2p = packed["w2"], packed["b2"]
    w3p, b3p = packed["w3"], packed["b3"]
    P = w1p.shape[0] // S                    # rows packed per lane-row (32)
    PA = w3p.shape[1]                        # P * action_size
    A = PA // P

    # Pack the batch onto lanes: (B, S) -> (Bp, P*S).  Contiguous reshape
    # (free) when B % P == 0; otherwise one small pad copy.
    pad = (-B) % P
    if pad:
        x = jnp.pad(x, ((0, pad), (0, 0)))
    Bp = (B + pad) // P
    xp = x.reshape(Bp, P * S)

    # Tile choice: ~1 MiB of packed x per grid step, but aim for >= 2 steps
    # so the batch axis shards across both TensorCores on v7x.  Oversized /
    # ragged last blocks only read garbage into rows that are clipped on
    # write (all ops are row-local in packed space).
    max_tile_p = 2048                                   # 2048 * 512 B = 1 MiB
    tile_p = max(8, min(max_tile_p, _round_up(-(-Bp // 2), 8)))
    grid = (pl.cdiv(Bp, tile_p),)

    flops = 2 * Bp * (w1p.shape[0] * w1p.shape[1]
                      + w2p.shape[0] * w2p.shape[1]
                      + w3p.shape[0] * w3p.shape[1])
    bytes_accessed = 4 * (xp.size + Bp * PA
                          + w1p.size + w2p.size + w3p.size)

    out_p = pl.pallas_call(
        qnetwork_kernel,
        out_shape=jax.ShapeDtypeStruct((Bp, PA), jnp.float32),
        grid_spec=pltpu.PrefetchScalarGridSpec(
            num_scalar_prefetch=0,
            grid=grid,
            in_specs=[
                # packed activations: tiled over the packed-batch axis,
                # fully lane-dense (last dim = P*S = 128)
                pl.BlockSpec((tile_p, P * S), lambda i: (i, 0)),
                # packed weights / biases: full blocks, constant across grid
                pl.BlockSpec(w1p.shape, lambda i: (0, 0)),
                pl.BlockSpec(b1p.shape, lambda i: (0, 0)),
                pl.BlockSpec(w2p.shape, lambda i: (0, 0)),
                pl.BlockSpec(b2p.shape, lambda i: (0, 0)),
                pl.BlockSpec(w3p.shape, lambda i: (0, 0)),
                pl.BlockSpec(b3p.shape, lambda i: (0, 0)),
            ],
            out_specs=pl.BlockSpec((tile_p, PA), lambda i: (i, 0)),
        ),
        compiler_params=pltpu.CompilerParams(
            dimension_semantics=("parallel",),
            vmem_limit_bytes=32 * 1024 * 1024),
        cost_estimate=pl.CostEstimate(flops=flops, transcendentals=0,
                                      bytes_accessed=bytes_accessed),
    )(xp, w1p, b1p, w2p, b2p, w3p, b3p)

    # (Bp, P*A) -> (Bp*P, A): free reshape; slice drops pad rows (no-op when
    # B % P == 0).  No wrapper transpose.
    return out_p.reshape(Bp * P, A)[:B]


def init_qnetwork_params(key, state_size, action_size):
    """Deterministic init mirroring torch.nn.Linear defaults:
    U(-1/sqrt(fan_in), 1/sqrt(fan_in)) for both weight and bias.
    Weights stored as (out_features, in_features), biases as (out,)."""
    dims = [(state_size, 20), (20, 8), (8, action_size)]
    params = {}
    for n, (fan_in, fan_out) in enumerate(dims, start=1):
        key, kw, kb = jax.random.split(key, 3)
        bound = 1.0 / float(fan_in) ** 0.5
        params[f"w{n}"] = jax.random.uniform(
            kw, (fan_out, fan_in), jnp.float32, -bound, bound)
        params[f"b{n}"] = jax.random.uniform(
            kb, (fan_out,), jnp.float32, -bound, bound)
    return params


def qnetwork_ref(x, params):
    """Pure-JAX reference (unpacked weights) for correctness checking."""
    h = jnp.maximum(x @ params["w1"].T + params["b1"], 0.0)
    h = jnp.maximum(h @ params["w2"].T + params["b2"], 0.0)
    return h @ params["w3"].T + params["b3"]


if __name__ == "__main__":
    key = jax.random.PRNGKey(0)
    state_size, action_size = 4, 2

    kp, kx, kx2 = jax.random.split(key, 3)
    params = init_qnetwork_params(kp, state_size, action_size)
    packed = pack_qnetwork_params(params, state_size)

    # Small demo batch (B=2): single grid step, packed into one lane-row.
    x = jax.random.normal(kx, (2, state_size), jnp.float32)
    out = jax.block_until_ready(qnetwork_forward(x, packed))
    ref = qnetwork_ref(x, params)
    assert out.shape == (2, action_size)
    assert jnp.allclose(out, ref, atol=2e-2, rtol=2e-2), \
        float(jnp.max(jnp.abs(out - ref)))

    # Larger batch, not a multiple of the packing factor: exercises the pad
    # path, a multi-step grid and a ragged last block.
    x2 = jax.random.normal(kx2, (300, state_size), jnp.float32)
    out2 = jax.block_until_ready(qnetwork_forward(x2, packed))
    ref2 = qnetwork_ref(x2, params)
    assert out2.shape == (300, action_size)
    assert jnp.allclose(out2, ref2, atol=2e-2, rtol=2e-2), \
        float(jnp.max(jnp.abs(out2 - ref2)))

    print("KERNEL_OK")
</pallas_src>

<mosaic_0001>
module attributes {stable_mosaic.version = 11 : i64} {
  func.func @qnetwork_kernel(%arg0: i32, %arg1: memref<8x128xf32, #tpu.memory_space<vmem>>, %arg2: memref<128x640xf32, #tpu.memory_space<vmem>>, %arg3: memref<1x640xf32, #tpu.memory_space<vmem>>, %arg4: memref<640x256xf32, #tpu.memory_space<vmem>>, %arg5: memref<1x256xf32, #tpu.memory_space<vmem>>, %arg6: memref<256x64xf32, #tpu.memory_space<vmem>>, %arg7: memref<1x64xf32, #tpu.memory_space<vmem>>, %arg8: memref<8x64xf32, #tpu.memory_space<vmem>>) attributes {dimension_semantics = [#tpu.dimension_semantics<parallel>], iteration_bounds = array<i64: 1>, scalar_prefetch = 0 : i64, scratch_operands = 0 : i64, tpu.core_type = #tpu.core_type<tc>, window_params = [{transform_indices = @transform_0, window_bounds = array<i64: 8, 128>}, {pipeline_mode = #tpu.pipeline_mode<synchronous>, transform_indices = @transform_1, window_bounds = array<i64: 128, 640>}, {pipeline_mode = #tpu.pipeline_mode<synchronous>, transform_indices = @transform_2, window_bounds = array<i64: 1, 640>}, {pipeline_mode = #tpu.pipeline_mode<synchronous>, transform_indices = @transform_3, window_bounds = array<i64: 640, 256>}, {pipeline_mode = #tpu.pipeline_mode<synchronous>, transform_indices = @transform_4, window_bounds = array<i64: 1, 256>}, {pipeline_mode = #tpu.pipeline_mode<synchronous>, transform_indices = @transform_5, window_bounds = array<i64: 256, 64>}, {pipeline_mode = #tpu.pipeline_mode<synchronous>, transform_indices = @transform_6, window_bounds = array<i64: 1, 64>}, {transform_indices = @transform_7, window_bounds = array<i64: 8, 64>}]} {
    %c0 = arith.constant 0 : index
    %c0_0 = arith.constant 0 : index
    %0 = vector.load %arg1[%c0, %c0_0] : memref<8x128xf32, #tpu.memory_space<vmem>>, vector<8x128xf32>
    %c0_1 = arith.constant 0 : index
    %c0_2 = arith.constant 0 : index
    %1 = vector.load %arg2[%c0_1, %c0_2] : memref<128x640xf32, #tpu.memory_space<vmem>>, vector<128x640xf32>
    %cst = arith.constant dense<0.000000e+00> : vector<8x640xf32>
    %2 = tpu.matmul %0, %1, %cst {dimension_numbers = #tpu.dot_dimension_numbers<[1], [0], [0], [1], [0, 0, 1, 1], [], []>} : vector<8x128xf32>, vector<128x640xf32>, vector<8x640xf32> -> vector<8x640xf32>
    %c0_3 = arith.constant 0 : index
    %c0_4 = arith.constant 0 : index
    %3 = vector.load %arg3[%c0_3, %c0_4] : memref<1x640xf32, #tpu.memory_space<vmem>>, vector<1x640xf32>
    %4 = vector.broadcast %3 : vector<1x640xf32> to vector<8x640xf32>
    %5 = arith.addf %2, %4 : vector<8x640xf32>
    %cst_5 = arith.constant 0.000000e+00 : f32
    %6 = vector.broadcast %cst_5 : f32 to vector<8x640xf32>
    %7 = arith.maximumf %5, %6 : vector<8x640xf32>
    %c0_6 = arith.constant 0 : index
    %c0_7 = arith.constant 0 : index
    %8 = vector.load %arg4[%c0_6, %c0_7] : memref<640x256xf32, #tpu.memory_space<vmem>>, vector<640x256xf32>
    %cst_8 = arith.constant dense<0.000000e+00> : vector<8x256xf32>
    %9 = tpu.matmul %7, %8, %cst_8 {dimension_numbers = #tpu.dot_dimension_numbers<[1], [0], [0], [1], [0, 0, 1, 1], [], []>} : vector<8x640xf32>, vector<640x256xf32>, vector<8x256xf32> -> vector<8x256xf32>
    %c0_9 = arith.constant 0 : index
    %c0_10 = arith.constant 0 : index
    %10 = vector.load %arg5[%c0_9, %c0_10] : memref<1x256xf32, #tpu.memory_space<vmem>>, vector<1x256xf32>
    %11 = vector.broadcast %10 : vector<1x256xf32> to vector<8x256xf32>
    %12 = arith.addf %9, %11 : vector<8x256xf32>
    %cst_11 = arith.constant 0.000000e+00 : f32
    %13 = vector.broadcast %cst_11 : f32 to vector<8x256xf32>
    %14 = arith.maximumf %12, %13 : vector<8x256xf32>
    %c0_12 = arith.constant 0 : index
    %c0_13 = arith.constant 0 : index
    %15 = vector.load %arg6[%c0_12, %c0_13] : memref<256x64xf32, #tpu.memory_space<vmem>>, vector<256x64xf32>
    %cst_14 = arith.constant dense<0.000000e+00> : vector<8x64xf32>
    %16 = tpu.matmul %14, %15, %cst_14 {dimension_numbers = #tpu.dot_dimension_numbers<[1], [0], [0], [1], [0, 0, 1, 1], [], []>} : vector<8x256xf32>, vector<256x64xf32>, vector<8x64xf32> -> vector<8x64xf32>
    %c0_15 = arith.constant 0 : index
    %c0_16 = arith.constant 0 : index
    %17 = vector.load %arg7[%c0_15, %c0_16] : memref<1x64xf32, #tpu.memory_space<vmem>>, vector<1x64xf32>
    %18 = vector.broadcast %17 : vector<1x64xf32> to vector<8x64xf32>
    %19 = arith.addf %16, %18 : vector<8x64xf32>
    %c0_17 = arith.constant 0 : index
    %c0_18 = arith.constant 0 : index
    %20 = vector.load %arg8[%c0_17, %c0_18] : memref<8x64xf32, #tpu.memory_space<vmem>>, vector<8x64xf32>
    tpu.vector_store %arg8[%c0_17, %c0_18], %19 {strides = array<i32>} : memref<8x64xf32, #tpu.memory_space<vmem>>, vector<8x64xf32>,
    return
  }
  func.func @transform_0(%arg0: i32) -> (i32, i32) {
    %c0_i32 = arith.constant 0 : i32
    %c0_i32_0 = arith.constant 0 : i32
    return %arg0, %c0_i32 : i32, i32
  }
  func.func @transform_1(%arg0: i32) -> (i32, i32) {
    %c0_i32 = arith.constant 0 : i32
    %c0_i32_0 = arith.constant 0 : i32
    %c0_i32_1 = arith.constant 0 : i32
    return %c0_i32, %c0_i32_0 : i32, i32
  }
  func.func @transform_2(%arg0: i32) -> (i32, i32) {
    %c0_i32 = arith.constant 0 : i32
    %c0_i32_0 = arith.constant 0 : i32
    %c0_i32_1 = arith.constant 0 : i32
    return %c0_i32, %c0_i32_0 : i32, i32
  }
  func.func @transform_3(%arg0: i32) -> (i32, i32) {
    %c0_i32 = arith.constant 0 : i32
    %c0_i32_0 = arith.constant 0 : i32
    %c0_i32_1 = arith.constant 0 : i32
    return %c0_i32, %c0_i32_0 : i32, i32
  }
  func.func @transform_4(%arg0: i32) -> (i32, i32) {
    %c0_i32 = arith.constant 0 : i32
    %c0_i32_0 = arith.constant 0 : i32
    %c0_i32_1 = arith.constant 0 : i32
    return %c0_i32, %c0_i32_0 : i32, i32
  }
  func.func @transform_5(%arg0: i32) -> (i32, i32) {
    %c0_i32 = arith.constant 0 : i32
    %c0_i32_0 = arith.constant 0 : i32
    %c0_i32_1 = arith.constant 0 : i32
    return %c0_i32, %c0_i32_0 : i32, i32
  }
  func.func @transform_6(%arg0: i32) -> (i32, i32) {
    %c0_i32 = arith.constant 0 : i32
    %c0_i32_0 = arith.constant 0 : i32
    %c0_i32_1 = arith.constant 0 : i32
    return %c0_i32, %c0_i32_0 : i32, i32
  }
  func.func @transform_7(%arg0: i32) -> (i32, i32) {
    %c0_i32 = arith.constant 0 : i32
    %c0_i32_0 = arith.constant 0 : i32
    return %arg0, %c0_i32 : i32, i32
  }
}

</mosaic_0001>

<llo_original>
// kernel: qnetwork_forward.1
$region0: #{qnetwork_forward.1}
  #allocation0 [shape = 'u32[]', space=smem, size = 0x4, offset = 0x4, fixed_abs, tag = 'smem constant byte address 0x4 - core index']
  #allocation1 [shape = 'u32[72,128]{1,0:T(1,128)}', space=vmem, size = 0x9000, scoped, tag = 'internal scratch']
  %s0 = inlined_call_operand.vmem [shape: f32[1,128], index: 0, kind: input, shape index: {}]
  %s1 = inlined_call_operand.hbm [shape: f32[128,640], index: 1, kind: input, shape index: {}]
  %s2 = inlined_call_operand.vmem [shape: f32[1,640], index: 2, kind: input, shape index: {}]
  %s3 = inlined_call_operand.hbm [shape: f32[640,256], index: 3, kind: input, shape index: {}]
  %s4 = inlined_call_operand.vmem [shape: f32[1,256], index: 4, kind: input, shape index: {}]
  %s5 = inlined_call_operand.vmem [shape: f32[256,64], index: 5, kind: input, shape index: {}]
  %s6 = inlined_call_operand.vmem [shape: f32[1,64], index: 6, kind: input, shape index: {}]
  %s7 = inlined_call_operand.vmem [shape: f32[1,64], index: 7, kind: output, shape index: {}]
  %s8 = sld [smem:[#allocation0]]
  $region76: #{qnetwork_forward.1} parent=0
    _
  %s10 = ssub.s32 1, %s8
  %s11 = scalar_select 0, %s10, %s8
  $region1: #{qnetwork_forward.1} parent=0
    #allocation2 [shape = 'u8[327680]{0}', space=vmem, size = 0x50000, scoped, tag = 'input window, operand 1, single buffered']
    #allocation3 [shape = 's32[1]{0}', space=sflag, size = 0x4, scoped, tag = 'scoped memory for qnetwork_forward.1']
    #allocation4 [shape = 'u8[655360]{0}', space=vmem, size = 0xa0000, scoped, tag = 'input window, operand 3, single buffered']
    #allocation5 [shape = 's32[1]{0}', space=sflag, size = 0x4, scoped, tag = 'scoped memory for qnetwork_forward.1']
    #allocation6 [shape = 'u8[4096]{0}', space=vmem, size = 0x1000, scoped, tag = 'output window, operand 0, single buffered']
    %12 = vsyncpa [#allocation3], 0
    %13 = vsyncpa [#allocation5], 0
    // Predicated region
    $region2: #{qnetwork_forward.1} parent=1 // pred_check
      _
    $region3: #{qnetwork_forward.1} parent=1 // pred_check_branch
      %15 = sbr.rel (0) target = $region5
    $region4: #{qnetwork_forward.1} parent=1 // pred_region
      _
    $region5: #{qnetwork_forward.1} parent=1 // pred_fallthru
      _
    // Predicated region
    $region6: #{qnetwork_forward.1} parent=1 // pred_check
      _
    $region7: #{qnetwork_forward.1} parent=1 // pred_check_branch
      %17 = sbr.rel (0) target = $region9
    $region8: #{qnetwork_forward.1} parent=1 // pred_region
      %19 = vsyncadd [#allocation3], 0
      %s20 = sshll.u32 %s1, 4
      %s21 = int_to_ptr.hbm [resolvable:$true] %s20
      %s22 = sshll.u32 [#allocation2], 4
      %s23 = int_to_ptr.vmem [resolvable:$true] %s22
      %28 = dma.hbm_to_vmem [thread:$0]  %s21, 10240, %s23, [#allocation3], 640, 640, 40
    $region9: #{qnetwork_forward.1} parent=1 // pred_fallthru
      _
    // Predicated region
    $region10: #{qnetwork_forward.1} parent=1 // pred_check
      _
    $region11: #{qnetwork_forward.1} parent=1 // pred_check_branch
      %30 = sbr.rel (0) target = $region13
    $region12: #{qnetwork_forward.1} parent=1 // pred_region
      _
    $region13: #{qnetwork_forward.1} parent=1 // pred_fallthru
      _
    // Predicated region
    $region14: #{qnetwork_forward.1} parent=1 // pred_check
      _
    $region15: #{qnetwork_forward.1} parent=1 // pred_check_branch
      %32 = sbr.rel (0) target = $region17
    $region16: #{qnetwork_forward.1} parent=1 // pred_region
      %34 = vsyncadd [#allocation5], 0
      %s35 = sshll.u32 %s3, 4
      %s36 = int_to_ptr.hbm [resolvable:$true] %s35
      %s37 = sshll.u32 [#allocation4], 4
      %s38 = int_to_ptr.vmem [resolvable:$true] %s37
      %43 = dma.hbm_to_vmem [thread:$0]  %s36, 20480, %s38, [#allocation5], 256, 256, 16
    $region17: #{qnetwork_forward.1} parent=1 // pred_fallthru
      _
    // Predicated region
    $region18: #{qnetwork_forward.1} parent=1 // pred_check
      _
    $region19: #{qnetwork_forward.1} parent=1 // pred_check_branch
      %45 = sbr.rel (0) target = $region21
    $region20: #{qnetwork_forward.1} parent=1 // pred_region
      _
    $region21: #{qnetwork_forward.1} parent=1 // pred_fallthru
      _
    // Predicated region
    $region22: #{qnetwork_forward.1} parent=1 // pred_check
      _
    $region23: #{qnetwork_forward.1} parent=1 // pred_check_branch
      %47 = sbr.rel (0) target = $region25
    $region24: #{qnetwork_forward.1} parent=1 // pred_region
      _
    $region25: #{qnetwork_forward.1} parent=1 // pred_fallthru
      _
    // Predicated region
    $region26: #{qnetwork_forward.1} parent=1 // pred_check
      _
    $region27: #{qnetwork_forward.1} parent=1 // pred_check_branch
      %49 = sbr.rel (0) target = $region29
    $region28: #{qnetwork_forward.1} parent=1 // pred_region
      _
    $region29: #{qnetwork_forward.1} parent=1 // pred_fallthru
      _
    // Predicated region
    $region30: #{qnetwork_forward.1} parent=1 // pred_check
      _
    $region31: #{qnetwork_forward.1} parent=1 // pred_check_branch
      %51 = sbr.rel (0) target = $region33
    $region32: #{qnetwork_forward.1} parent=1 // pred_region
      %53 = dma.done [#allocation3], 10240
    $region33: #{qnetwork_forward.1} parent=1 // pred_fallthru
      _
    // Predicated region
    $region34: #{qnetwork_forward.1} parent=1 // pred_check
      _
    $region35: #{qnetwork_forward.1} parent=1 // pred_check_branch
      %55 = sbr.rel (0) target = $region37
    $region36: #{qnetwork_forward.1} parent=1 // pred_region
      %57 = dma.done [#allocation5], 20480
    $region37: #{qnetwork_forward.1} parent=1 // pred_fallthru
      _
    %v58 = vld [vmem:[%s0] sm:$0xff]
    %v59 = vld [vmem:[#allocation2] sm:$0xff]
    %v60 = vld [vmem:[#allocation2 + $0x8] sm:$0xff]
    %v61 = vld [vmem:[#allocation2 + $0x10] sm:$0xff]
    %v62 = vld [vmem:[#allocation2 + $0x18] sm:$0xff]
    %v63 = vld [vmem:[#allocation2 + $0x20] sm:$0xff]
    %v64 = vld [vmem:[#allocation2 + $0x28] sm:$0xff]
    %v65 = vld [vmem:[#allocation2 + $0x30] sm:$0xff]
    %v66 = vld [vmem:[#allocation2 + $0x38] sm:$0xff]
    %v67 = vld [vmem:[#allocation2 + $0x40] sm:$0xff]
    %v68 = vld [vmem:[#allocation2 + $0x48] sm:$0xff]
    %v69 = vld [vmem:[#allocation2 + $0x50] sm:$0xff]
    %v70 = vld [vmem:[#allocation2 + $0x58] sm:$0xff]
    %v71 = vld [vmem:[#allocation2 + $0x60] sm:$0xff]
    %v72 = vld [vmem:[#allocation2 + $0x68] sm:$0xff]
    %v73 = vld [vmem:[#allocation2 + $0x70] sm:$0xff]
    %v74 = vld [vmem:[#allocation2 + $0x78] sm:$0xff]
    %v75 = vld [vmem:[#allocation2 + $0x80] sm:$0xff]
    %v76 = vld [vmem:[#allocation2 + $0x88] sm:$0xff]
    %v77 = vld [vmem:[#allocation2 + $0x90] sm:$0xff]
    %v78 = vld [vmem:[#allocation2 + $0x98] sm:$0xff]
    %v79 = vld [vmem:[#allocation2 + $0xa0] sm:$0xff]
    %v80 = vld [vmem:[#allocation2 + $0xa8] sm:$0xff]
    %v81 = vld [vmem:[#allocation2 + $0xb0] sm:$0xff]
    %v82 = vld [vmem:[#allocation2 + $0xb8] sm:$0xff]
    %v83 = vld [vmem:[#allocation2 + $0xc0] sm:$0xff]
    %v84 = vld [vmem:[#allocation2 + $0xc8] sm:$0xff]
    %v85 = vld [vmem:[#allocation2 + $0xd0] sm:$0xff]
    %v86 = vld [vmem:[#allocation2 + $0xd8] sm:$0xff]
    %v87 = vld [vmem:[#allocation2 + $0xe0] sm:$0xff]
    %v88 = vld [vmem:[#allocation2 + $0xe8] sm:$0xff]
    %v89 = vld [vmem:[#allocation2 + $0xf0] sm:$0xff]
    %v90 = vld [vmem:[#allocation2 + $0xf8] sm:$0xff]
    %v91 = vld [vmem:[#allocation2 + $0x100] sm:$0xff]
    %v92 = vld [vmem:[#allocation2 + $0x108] sm:$0xff]
    %v93 = vld [vmem:[#allocation2 + $0x110] sm:$0xff]
    %v94 = vld [vmem:[#allocation2 + $0x118] sm:$0xff]
    %v95 = vld [vmem:[#allocation2 + $0x120] sm:$0xff]
    %v96 = vld [vmem:[#allocation2 + $0x128] sm:$0xff]
    %v97 = vld [vmem:[#allocation2 + $0x130] sm:$0xff]
    %v98 = vld [vmem:[#allocation2 + $0x138] sm:$0xff]
    %v99 = vld [vmem:[#allocation2 + $0x140] sm:$0xff]
    %v100 = vld [vmem:[#allocation2 + $0x148] sm:$0xff]
    %v101 = vld [vmem:[#allocation2 + $0x150] sm:$0xff]
    %v102 = vld [vmem:[#allocation2 + $0x158] sm:$0xff]
    %v103 = vld [vmem:[#allocation2 + $0x160] sm:$0xff]
    %v104 = vld [vmem:[#allocation2 + $0x168] sm:$0xff]
    %v105 = vld [vmem:[#allocation2 + $0x170] sm:$0xff]
    %v106 = vld [vmem:[#allocation2 + $0x178] sm:$0xff]
    %v107 = vld [vmem:[#allocation2 + $0x180] sm:$0xff]
    %v108 = vld [vmem:[#allocation2 + $0x188] sm:$0xff]
    %v109 = vld [vmem:[#allocation2 + $0x190] sm:$0xff]
    %v110 = vld [vmem:[#allocation2 + $0x198] sm:$0xff]
    %v111 = vld [vmem:[#allocation2 + $0x1a0] sm:$0xff]
    %v112 = vld [vmem:[#allocation2 + $0x1a8] sm:$0xff]
    %v113 = vld [vmem:[#allocation2 + $0x1b0] sm:$0xff]
    %v114 = vld [vmem:[#allocation2 + $0x1b8] sm:$0xff]
    %v115 = vld [vmem:[#allocation2 + $0x1c0] sm:$0xff]
    %v116 = vld [vmem:[#allocation2 + $0x1c8] sm:$0xff]
    %v117 = vld [vmem:[#allocation2 + $0x1d0] sm:$0xff]
    %v118 = vld [vmem:[#allocation2 + $0x1d8] sm:$0xff]
    %v119 = vld [vmem:[#allocation2 + $0x1e0] sm:$0xff]
    %v120 = vld [vmem:[#allocation2 + $0x1e8] sm:$0xff]
    %v121 = vld [vmem:[#allocation2 + $0x1f0] sm:$0xff]
    %v122 = vld [vmem:[#allocation2 + $0x1f8] sm:$0xff]
    %v123 = vld [vmem:[#allocation2 + $0x200] sm:$0xff]
    %v124 = vld [vmem:[#allocation2 + $0x208] sm:$0xff]
    %v125 = vld [vmem:[#allocation2 + $0x210] sm:$0xff]
    %v126 = vld [vmem:[#allocation2 + $0x218] sm:$0xff]
    %v127 = vld [vmem:[#allocation2 + $0x220] sm:$0xff]
    %v128 = vld [vmem:[#allocation2 + $0x228] sm:$0xff]
    %v129 = vld [vmem:[#allocation2 + $0x230] sm:$0xff]
    %v130 = vld [vmem:[#allocation2 + $0x238] sm:$0xff]
    %v131 = vld [vmem:[#allocation2 + $0x240] sm:$0xff]
    %v132 = vld [vmem:[#allocation2 + $0x248] sm:$0xff]
    %v133 = vld [vmem:[#allocation2 + $0x250] sm:$0xff]
    %v134 = vld [vmem:[#allocation2 + $0x258] sm:$0xff]
    %v135 = vld [vmem:[#allocation2 + $0x260] sm:$0xff]
    %v136 = vld [vmem:[#allocation2 + $0x268] sm:$0xff]
    %v137 = vld [vmem:[#allocation2 + $0x270] sm:$0xff]
    %v138 = vld [vmem:[#allocation2 + $0x278] sm:$0xff]
    %v139 = vld [vmem:[%s2] sm:$0x1f]
    %v141 = vperm.slane %v139, 0
    %v142 = vperm.slane %v139, 1
    %v143 = vperm.slane %v139, 2
    %v144 = vperm.slane %v139, 3
    %v145 = vperm.slane %v139, 4
    %151 = vmatpush.msra.mxu0 %v134
    %152 = vmatpush.msra.mxu0 %v129
    %153 = vmatpush.msra.mxu0 %v124
    %154 = vmatpush.msra.mxu0 %v119
    %155 = vmatpush.msra.mxu0 %v114
    %156 = vmatpush.msra.mxu0 %v109
    %157 = vmatpush.msra.mxu0 %v104
    %158 = vmatpush.msra.mxu0 %v99
    %159 = vmatpush.msra.mxu0 %v94
    %160 = vmatpush.msra.mxu0 %v89
    %161 = vmatpush.msra.mxu0 %v84
    %162 = vmatpush.msra.mxu0 %v79
    %163 = vmatpush.msra.mxu0 %v74
    %164 = vmatpush.msra.mxu0 %v69
    %165 = vmatpush.msra.mxu0 %v64
    %166 = vmatpush.msra.mxu0 %v59
    %167 = vmatmul.f32.gmra.mxu0 %v58
    %v168 = vpop.f32.mrf.mxu0
    %v169 = vadd.f32 %v141, %v168
    %170 = vdwg.mxu0
    %171 = vmatpush.msra.mxu0 %v135
    %172 = vmatpush.msra.mxu0 %v130
    %173 = vmatpush.msra.mxu0 %v125
    %174 = vmatpush.msra.mxu0 %v120
    %175 = vmatpush.msra.mxu0 %v115
    %176 = vmatpush.msra.mxu0 %v110
    %177 = vmatpush.msra.mxu0 %v105
    %178 = vmatpush.msra.mxu0 %v100
    %179 = vmatpush.msra.mxu0 %v95
    %180 = vmatpush.msra.mxu0 %v90
    %181 = vmatpush.msra.mxu0 %v85
    %182 = vmatpush.msra.mxu0 %v80
    %183 = vmatpush.msra.mxu0 %v75
    %184 = vmatpush.msra.mxu0 %v70
    %185 = vmatpush.msra.mxu0 %v65
    %186 = vmatpush.msra.mxu0 %v60
    %187 = vmatmul.f32.gmra.mxu0 %v58
    %v188 = vpop.f32.mrf.mxu0
    %v189 = vadd.f32 %v142, %v188
    %190 = vdwg.mxu0
    %191 = vmatpush.msra.mxu0 %v136
    %192 = vmatpush.msra.mxu0 %v131
    %193 = vmatpush.msra.mxu0 %v126
    %194 = vmatpush.msra.mxu0 %v121
    %195 = vmatpush.msra.mxu0 %v116
    %196 = vmatpush.msra.mxu0 %v111
    %197 = vmatpush.msra.mxu0 %v106
    %198 = vmatpush.msra.mxu0 %v101
    %199 = vmatpush.msra.mxu0 %v96
    %200 = vmatpush.msra.mxu0 %v91
    %201 = vmatpush.msra.mxu0 %v86
    %202 = vmatpush.msra.mxu0 %v81
    %203 = vmatpush.msra.mxu0 %v76
    %204 = vmatpush.msra.mxu0 %v71
    %205 = vmatpush.msra.mxu0 %v66
    %206 = vmatpush.msra.mxu0 %v61
    %207 = vmatmul.f32.gmra.mxu0 %v58
    %v208 = vpop.f32.mrf.mxu0
    %v209 = vadd.f32 %v143, %v208
    %210 = vdwg.mxu0
    %211 = vmatpush.msra.mxu0 %v137
    %212 = vmatpush.msra.mxu0 %v132
    %213 = vmatpush.msra.mxu0 %v127
    %214 = vmatpush.msra.mxu0 %v122
    %215 = vmatpush.msra.mxu0 %v117
    %216 = vmatpush.msra.mxu0 %v112
    %217 = vmatpush.msra.mxu0 %v107
    %218 = vmatpush.msra.mxu0 %v102
    %219 = vmatpush.msra.mxu0 %v97
    %220 = vmatpush.msra.mxu0 %v92
    %221 = vmatpush.msra.mxu0 %v87
    %222 = vmatpush.msra.mxu0 %v82
    %223 = vmatpush.msra.mxu0 %v77
    %224 = vmatpush.msra.mxu0 %v72
    %225 = vmatpush.msra.mxu0 %v67
    %226 = vmatpush.msra.mxu0 %v62
    %227 = vmatmul.f32.gmra.mxu0 %v58
    %v228 = vpop.f32.mrf.mxu0
    %v229 = vadd.f32 %v144, %v228
    %230 = vdwg.mxu0
    %231 = vmatpush.msra.mxu0 %v138
    %232 = vmatpush.msra.mxu0 %v133
    %233 = vmatpush.msra.mxu0 %v128
    %234 = vmatpush.msra.mxu0 %v123
    %235 = vmatpush.msra.mxu0 %v118
    %236 = vmatpush.msra.mxu0 %v113
    %237 = vmatpush.msra.mxu0 %v108
    %238 = vmatpush.msra.mxu0 %v103
    %239 = vmatpush.msra.mxu0 %v98
    %240 = vmatpush.msra.mxu0 %v93
    %241 = vmatpush.msra.mxu0 %v88
    %242 = vmatpush.msra.mxu0 %v83
    %243 = vmatpush.msra.mxu0 %v78
    %244 = vmatpush.msra.mxu0 %v73
    %245 = vmatpush.msra.mxu0 %v68
    %246 = vmatpush.msra.mxu0 %v63
    %247 = vmatmul.f32.gmra.mxu0 %v58
    %v248 = vpop.f32.mrf.mxu0
    %v249 = vadd.f32 %v145, %v248
    %250 = vdwg.mxu0
    %v251 = vmax.f32 %v169, 0.0
    %v252 = vmax.f32 %v189, 0.0
    %v253 = vmax.f32 %v209, 0.0
    %v254 = vmax.f32 %v229, 0.0
    %v255 = vmax.f32 %v249, 0.0
    %v256 = vld [vmem:[#allocation4] sm:$0xff]
    %v257 = vld [vmem:[#allocation4 + $0x8] sm:$0xff]
    %v258 = vld [vmem:[#allocation4 + $0x10] sm:$0xff]
    %v259 = vld [vmem:[#allocation4 + $0x18] sm:$0xff]
    %v260 = vld [vmem:[#allocation4 + $0x20] sm:$0xff]
    %v261 = vld [vmem:[#allocation4 + $0x28] sm:$0xff]
    %v262 = vld [vmem:[#allocation4 + $0x30] sm:$0xff]
    %v263 = vld [vmem:[#allocation4 + $0x38] sm:$0xff]
    %v264 = vld [vmem:[#allocation4 + $0x40] sm:$0xff]
    %v265 = vld [vmem:[#allocation4 + $0x48] sm:$0xff]
    %v266 = vld [vmem:[#allocation4 + $0x50] sm:$0xff]
    %v267 = vld [vmem:[#allocation4 + $0x58] sm:$0xff]
    %v268 = vld [vmem:[#allocation4 + $0x60] sm:$0xff]
    %v269 = vld [vmem:[#allocation4 + $0x68] sm:$0xff]
    %v270 = vld [vmem:[#allocation4 + $0x70] sm:$0xff]
    %v271 = vld [vmem:[#allocation4 + $0x78] sm:$0xff]
    %v272 = vld [vmem:[#allocation4 + $0x80] sm:$0xff]
    %v273 = vld [vmem:[#allocation4 + $0x88] sm:$0xff]
    %v274 = vld [vmem:[#allocation4 + $0x90] sm:$0xff]
    %v275 = vld [vmem:[#allocation4 + $0x98] sm:$0xff]
    %v276 = vld [vmem:[#allocation4 + $0xa0] sm:$0xff]
    %v277 = vld [vmem:[#allocation4 + $0xa8] sm:$0xff]
    %v278 = vld [vmem:[#allocation4 + $0xb0] sm:$0xff]
    %v279 = vld [vmem:[#allocation4 + $0xb8] sm:$0xff]
    %v280 = vld [vmem:[#allocation4 + $0xc0] sm:$0xff]
    %v281 = vld [vmem:[#allocation4 + $0xc8] sm:$0xff]
    %v282 = vld [vmem:[#allocation4 + $0xd0] sm:$0xff]
    %v283 = vld [vmem:[#allocation4 + $0xd8] sm:$0xff]
    %v284 = vld [vmem:[#allocation4 + $0xe0] sm:$0xff]
    %v285 = vld [vmem:[#allocation4 + $0xe8] sm:$0xff]
    %v286 = vld [vmem:[#allocation4 + $0xf0] sm:$0xff]
    %v287 = vld [vmem:[#allocation4 + $0xf8] sm:$0xff]
    %v288 = vld [vmem:[#allocation4 + $0x100] sm:$0xff]
    %v289 = vld [vmem:[#allocation4 + $0x108] sm:$0xff]
    %v290 = vld [vmem:[#allocation4 + $0x110] sm:$0xff]
    %v291 = vld [vmem:[#allocation4 + $0x118] sm:$0xff]
    %v292 = vld [vmem:[#allocation4 + $0x120] sm:$0xff]
    %v293 = vld [vmem:[#allocation4 + $0x128] sm:$0xff]
    %v294 = vld [vmem:[#allocation4 + $0x130] sm:$0xff]
    %v295 = vld [vmem:[#allocation4 + $0x138] sm:$0xff]
    %v296 = vld [vmem:[#allocation4 + $0x140] sm:$0xff]
    %v297 = vld [vmem:[#allocation4 + $0x148] sm:$0xff]
    %v298 = vld [vmem:[#allocation4 + $0x150] sm:$0xff]
    %v299 = vld [vmem:[#allocation4 + $0x158] sm:$0xff]
    %v300 = vld [vmem:[#allocation4 + $0x160] sm:$0xff]
    %v301 = vld [vmem:[#allocation4 + $0x168] sm:$0xff]
    %v302 = vld [vmem:[#allocation4 + $0x170] sm:$0xff]
    %v303 = vld [vmem:[#allocation4 + $0x178] sm:$0xff]
    %v304 = vld [vmem:[#allocation4 + $0x180] sm:$0xff]
    %v305 = vld [vmem:[#allocation4 + $0x188] sm:$0xff]
    %v306 = vld [vmem:[#allocation4 + $0x190] sm:$0xff]
    %v307 = vld [vmem:[#allocation4 + $0x198] sm:$0xff]
    %v308 = vld [vmem:[#allocation4 + $0x1a0] sm:$0xff]
    %v309 = vld [vmem:[#allocation4 + $0x1a8] sm:$0xff]
    %v310 = vld [vmem:[#allocation4 + $0x1b0] sm:$0xff]
    %v311 = vld [vmem:[#allocation4 + $0x1b8] sm:$0xff]
    %v312 = vld [vmem:[#allocation4 + $0x1c0] sm:$0xff]
    %v313 = vld [vmem:[#allocation4 + $0x1c8] sm:$0xff]
    %v314 = vld [vmem:[#allocation4 + $0x1d0] sm:$0xff]
    %v315 = vld [vmem:[#allocation4 + $0x1d8] sm:$0xff]
    %v316 = vld [vmem:[#allocation4 + $0x1e0] sm:$0xff]
    %v317 = vld [vmem:[#allocation4 + $0x1e8] sm:$0xff]
    %v318 = vld [vmem:[#allocation4 + $0x1f0] sm:$0xff]
    %v319 = vld [vmem:[#allocation4 + $0x1f8] sm:$0xff]
    %v320 = vld [vmem:[#allocation4 + $0x200] sm:$0xff]
    %v321 = vld [vmem:[#allocation4 + $0x208] sm:$0xff]
    %v322 = vld [vmem:[#allocation4 + $0x210] sm:$0xff]
    %v323 = vld [vmem:[#allocation4 + $0x218] sm:$0xff]
    %v324 = vld [vmem:[#allocation4 + $0x220] sm:$0xff]
    %v325 = vld [vmem:[#allocation4 + $0x228] sm:$0xff]
    %v326 = vld [vmem:[#allocation4 + $0x230] sm:$0xff]
    %v327 = vld [vmem:[#allocation4 + $0x238] sm:$0xff]
    %v328 = vld [vmem:[#allocation4 + $0x240] sm:$0xff]
    %v329 = vld [vmem:[#allocation4 + $0x248] sm:$0xff]
    %v330 = vld [vmem:[#allocation4 + $0x250] sm:$0xff]
    %v331 = vld [vmem:[#allocation4 + $0x258] sm:$0xff]
    %v332 = vld [vmem:[#allocation4 + $0x260] sm:$0xff]
    %v333 = vld [vmem:[#allocation4 + $0x268] sm:$0xff]
    %v334 = vld [vmem:[#allocation4 + $0x270] sm:$0xff]
    %v335 = vld [vmem:[#allocation4 + $0x278] sm:$0xff]
    %v336 = vld [vmem:[#allocation4 + $0x280] sm:$0xff]
    %v337 = vld [vmem:[#allocation4 + $0x288] sm:$0xff]
    %v338 = vld [vmem:[#allocation4 + $0x290] sm:$0xff]
    %v339 = vld [vmem:[#allocation4 + $0x298] sm:$0xff]
    %v340 = vld [vmem:[#allocation4 + $0x2a0] sm:$0xff]
    %v341 = vld [vmem:[#allocation4 + $0x2a8] sm:$0xff]
    %v342 = vld [vmem:[#allocation4 + $0x2b0] sm:$0xff]
    %v343 = vld [vmem:[#allocation4 + $0x2b8] sm:$0xff]
    %v344 = vld [vmem:[#allocation4 + $0x2c0] sm:$0xff]
    %v345 = vld [vmem:[#allocation4 + $0x2c8] sm:$0xff]
    %v346 = vld [vmem:[#allocation4 + $0x2d0] sm:$0xff]
    %v347 = vld [vmem:[#allocation4 + $0x2d8] sm:$0xff]
    %v348 = vld [vmem:[#allocation4 + $0x2e0] sm:$0xff]
    %v349 = vld [vmem:[#allocation4 + $0x2e8] sm:$0xff]
    %v350 = vld [vmem:[#allocation4 + $0x2f0] sm:$0xff]
    %v351 = vld [vmem:[#allocation4 + $0x2f8] sm:$0xff]
    %v352 = vld [vmem:[#allocation4 + $0x300] sm:$0xff]
    %v353 = vld [vmem:[#allocation4 + $0x308] sm:$0xff]
    %v354 = vld [vmem:[#allocation4 + $0x310] sm:$0xff]
    %v355 = vld [vmem:[#allocation4 + $0x318] sm:$0xff]
    %v356 = vld [vmem:[#allocation4 + $0x320] sm:$0xff]
    %v357 = vld [vmem:[#allocation4 + $0x328] sm:$0xff]
    %v358 = vld [vmem:[#allocation4 + $0x330] sm:$0xff]
    %v359 = vld [vmem:[#allocation4 + $0x338] sm:$0xff]
    %v360 = vld [vmem:[#allocation4 + $0x340] sm:$0xff]
    %v361 = vld [vmem:[#allocation4 + $0x348] sm:$0xff]
    %v362 = vld [vmem:[#allocation4 + $0x350] sm:$0xff]
    %v363 = vld [vmem:[#allocation4 + $0x358] sm:$0xff]
    %v364 = vld [vmem:[#allocation4 + $0x360] sm:$0xff]
    %v365 = vld [vmem:[#allocation4 + $0x368] sm:$0xff]
    %v366 = vld [vmem:[#allocation4 + $0x370] sm:$0xff]
    %v367 = vld [vmem:[#allocation4 + $0x378] sm:$0xff]
    %v368 = vld [vmem:[#allocation4 + $0x380] sm:$0xff]
    %v369 = vld [vmem:[#allocation4 + $0x388] sm:$0xff]
    %v370 = vld [vmem:[#allocation4 + $0x390] sm:$0xff]
    %v371 = vld [vmem:[#allocation4 + $0x398] sm:$0xff]
    %v372 = vld [vmem:[#allocation4 + $0x3a0] sm:$0xff]
    %v373 = vld [vmem:[#allocation4 + $0x3a8] sm:$0xff]
    %v374 = vld [vmem:[#allocation4 + $0x3b0] sm:$0xff]
    %v375 = vld [vmem:[#allocation4 + $0x3b8] sm:$0xff]
    %v376 = vld [vmem:[#allocation4 + $0x3c0] sm:$0xff]
    %v377 = vld [vmem:[#allocation4 + $0x3c8] sm:$0xff]
    %v378 = vld [vmem:[#allocation4 + $0x3d0] sm:$0xff]
    %v379 = vld [vmem:[#allocation4 + $0x3d8] sm:$0xff]
    %v380 = vld [vmem:[#allocation4 + $0x3e0] sm:$0xff]
    %v381 = vld [vmem:[#allocation4 + $0x3e8] sm:$0xff]
    %v382 = vld [vmem:[#allocation4 + $0x3f0] sm:$0xff]
    %v383 = vld [vmem:[#allocation4 + $0x3f8] sm:$0xff]
    %v384 = vld [vmem:[#allocation4 + $0x400] sm:$0xff]
    %v385 = vld [vmem:[#allocation4 + $0x408] sm:$0xff]
    %v386 = vld [vmem:[#allocation4 + $0x410] sm:$0xff]
    %v387 = vld [vmem:[#allocation4 + $0x418] sm:$0xff]
    %v388 = vld [vmem:[#allocation4 + $0x420] sm:$0xff]
    %v389 = vld [vmem:[#allocation4 + $0x428] sm:$0xff]
    %v390 = vld [vmem:[#allocation4 + $0x430] sm:$0xff]
    %v391 = vld [vmem:[#allocation4 + $0x438] sm:$0xff]
    %v392 = vld [vmem:[#allocation4 + $0x440] sm:$0xff]
    %v393 = vld [vmem:[#allocation4 + $0x448] sm:$0xff]
    %v394 = vld [vmem:[#allocation4 + $0x450] sm:$0xff]
    %v395 = vld [vmem:[#allocation4 + $0x458] sm:$0xff]
    %v396 = vld [vmem:[#allocation4 + $0x460] sm:$0xff]
    %v397 = vld [vmem:[#allocation4 + $0x468] sm:$0xff]
    %v398 = vld [vmem:[#allocation4 + $0x470] sm:$0xff]
    %v399 = vld [vmem:[#allocation4 + $0x478] sm:$0xff]
    %v400 = vld [vmem:[#allocation4 + $0x480] sm:$0xff]
    %v401 = vld [vmem:[#allocation4 + $0x488] sm:$0xff]
    %v402 = vld [vmem:[#allocation4 + $0x490] sm:$0xff]
    %v403 = vld [vmem:[#allocation4 + $0x498] sm:$0xff]
    %v404 = vld [vmem:[#allocation4 + $0x4a0] sm:$0xff]
    %v405 = vld [vmem:[#allocation4 + $0x4a8] sm:$0xff]
    %v406 = vld [vmem:[#allocation4 + $0x4b0] sm:$0xff]
    %v407 = vld [vmem:[#allocation4 + $0x4b8] sm:$0xff]
    %v408 = vld [vmem:[#allocation4 + $0x4c0] sm:$0xff]
    %v409 = vld [vmem:[#allocation4 + $0x4c8] sm:$0xff]
    %v410 = vld [vmem:[#allocation4 + $0x4d0] sm:$0xff]
    %v411 = vld [vmem:[#allocation4 + $0x4d8] sm:$0xff]
    %v412 = vld [vmem:[#allocation4 + $0x4e0] sm:$0xff]
    %v413 = vld [vmem:[#allocation4 + $0x4e8] sm:$0xff]
    %v414 = vld [vmem:[#allocation4 + $0x4f0] sm:$0xff]
    %v415 = vld [vmem:[#allocation4 + $0x4f8] sm:$0xff]
    %v416 = vld [vmem:[%s4] sm:$0x3]
    %v418 = vperm.slane %v416, 0
    %v419 = vperm.slane %v416, 1
    %422 = vmatpush.msra.mxu0 %v286
    %423 = vmatpush.msra.mxu0 %v284
    %424 = vmatpush.msra.mxu0 %v282
    %425 = vmatpush.msra.mxu0 %v280
    %426 = vmatpush.msra.mxu0 %v278
    %427 = vmatpush.msra.mxu0 %v276
    %428 = vmatpush.msra.mxu0 %v274
    %429 = vmatpush.msra.mxu0 %v272
    %430 = vmatpush.msra.mxu0 %v270
    %431 = vmatpush.msra.mxu0 %v268
    %432 = vmatpush.msra.mxu0 %v266
    %433 = vmatpush.msra.mxu0 %v264
    %434 = vmatpush.msra.mxu0 %v262
    %435 = vmatpush.msra.mxu0 %v260
    %436 = vmatpush.msra.mxu0 %v258
    %437 = vmatpush.msra.mxu0 %v256
    %438 = vmatmul.f32.gmra.mxu0 %v251
    %v439 = vpop.f32.mrf.mxu0
    %v440 = vadd.f32 %v418, %v439
    %441 = vdwg.mxu0
    %442 = vmatpush.msra.mxu0 %v318
    %443 = vmatpush.msra.mxu0 %v316
    %444 = vmatpush.msra.mxu0 %v314
    %445 = vmatpush.msra.mxu0 %v312
    %446 = vmatpush.msra.mxu0 %v310
    %447 = vmatpush.msra.mxu0 %v308
    %448 = vmatpush.msra.mxu0 %v306
    %449 = vmatpush.msra.mxu0 %v304
    %450 = vmatpush.msra.mxu0 %v302
    %451 = vmatpush.msra.mxu0 %v300
    %452 = vmatpush.msra.mxu0 %v298
    %453 = vmatpush.msra.mxu0 %v296
    %454 = vmatpush.msra.mxu0 %v294
    %455 = vmatpush.msra.mxu0 %v292
    %456 = vmatpush.msra.mxu0 %v290
    %457 = vmatpush.msra.mxu0 %v288
    %458 = vmatmul.f32.gmra.mxu0 %v252
    %v459 = vpop.f32.mrf.mxu0
    %v460 = vadd.f32 %v440, %v459
    %461 = vdwg.mxu0
    %462 = vmatpush.msra.mxu0 %v350
    %463 = vmatpush.msra.mxu0 %v348
    %464 = vmatpush.msra.mxu0 %v346
    %465 = vmatpush.msra.mxu0 %v344
    %466 = vmatpush.msra.mxu0 %v342
    %467 = vmatpush.msra.mxu0 %v340
    %468 = vmatpush.msra.mxu0 %v338
    %469 = vmatpush.msra.mxu0 %v336
    %470 = vmatpush.msra.mxu0 %v334
    %471 = vmatpush.msra.mxu0 %v332
    %472 = vmatpush.msra.mxu0 %v330
    %473 = vmatpush.msra.mxu0 %v328
    %474 = vmatpush.msra.mxu0 %v326
    %475 = vmatpush.msra.mxu0 %v324
    %476 = vmatpush.msra.mxu0 %v322
    %477 = vmatpush.msra.mxu0 %v320
    %478 = vmatmul.f32.gmra.mxu0 %v253
    %v479 = vpop.f32.mrf.mxu0
    %v480 = vadd.f32 %v460, %v479
    %481 = vdwg.mxu0
    %482 = vmatpush.msra.mxu0 %v382
    %483 = vmatpush.msra.mxu0 %v380
    %484 = vmatpush.msra.mxu0 %v378
    %485 = vmatpush.msra.mxu0 %v376
    %486 = vmatpush.msra.mxu0 %v374
    %487 = vmatpush.msra.mxu0 %v372
    %488 = vmatpush.msra.mxu0 %v370
    %489 = vmatpush.msra.mxu0 %v368
    %490 = vmatpush.msra.mxu0 %v366
    %491 = vmatpush.msra.mxu0 %v364
    %492 = vmatpush.msra.mxu0 %v362
    %493 = vmatpush.msra.mxu0 %v360
    %494 = vmatpush.msra.mxu0 %v358
    %495 = vmatpush.msra.mxu0 %v356
    %496 = vmatpush.msra.mxu0 %v354
    %497 = vmatpush.msra.mxu0 %v352
    %498 = vmatmul.f32.gmra.mxu0 %v254
    %v499 = vpop.f32.mrf.mxu0
    %v500 = vadd.f32 %v480, %v499
    %501 = vdwg.mxu0
    %502 = vmatpush.msra.mxu0 %v414
    %503 = vmatpush.msra.mxu0 %v412
    %504 = vmatpush.msra.mxu0 %v410
    %505 = vmatpush.msra.mxu0 %v408
    %506 = vmatpush.msra.mxu0 %v406
    %507 = vmatpush.msra.mxu0 %v404
    %508 = vmatpush.msra.mxu0 %v402
    %509 = vmatpush.msra.mxu0 %v400
    %510 = vmatpush.msra.mxu0 %v398
    %511 = vmatpush.msra.mxu0 %v396
    %512 = vmatpush.msra.mxu0 %v394
    %513 = vmatpush.msra.mxu0 %v392
    %514 = vmatpush.msra.mxu0 %v390
    %515 = vmatpush.msra.mxu0 %v388
    %516 = vmatpush.msra.mxu0 %v386
    %517 = vmatpush.msra.mxu0 %v384
    %518 = vmatmul.f32.gmra.mxu0 %v255
    %v519 = vpop.f32.mrf.mxu0
    %v520 = vadd.f32 %v500, %v519
    %521 = vdwg.mxu0
    %522 = vmatpush.msra.mxu0 %v287
    %523 = vmatpush.msra.mxu0 %v285
    %524 = vmatpush.msra.mxu0 %v283
    %525 = vmatpush.msra.mxu0 %v281
    %526 = vmatpush.msra.mxu0 %v279
    %527 = vmatpush.msra.mxu0 %v277
    %528 = vmatpush.msra.mxu0 %v275
    %529 = vmatpush.msra.mxu0 %v273
    %530 = vmatpush.msra.mxu0 %v271
    %531 = vmatpush.msra.mxu0 %v269
    %532 = vmatpush.msra.mxu0 %v267
    %533 = vmatpush.msra.mxu0 %v265
    %534 = vmatpush.msra.mxu0 %v263
    %535 = vmatpush.msra.mxu0 %v261
    %536 = vmatpush.msra.mxu0 %v259
    %537 = vmatpush.msra.mxu0 %v257
    %538 = vmatmul.f32.gmra.mxu0 %v251
    %v539 = vpop.f32.mrf.mxu0
    %v540 = vadd.f32 %v419, %v539
    %541 = vdwg.mxu0
    %542 = vmatpush.msra.mxu0 %v319
    %543 = vmatpush.msra.mxu0 %v317
    %544 = vmatpush.msra.mxu0 %v315
    %545 = vmatpush.msra.mxu0 %v313
    %546 = vmatpush.msra.mxu0 %v311
    %547 = vmatpush.msra.mxu0 %v309
    %548 = vmatpush.msra.mxu0 %v307
    %549 = vmatpush.msra.mxu0 %v305
    %550 = vmatpush.msra.mxu0 %v303
    %551 = vmatpush.msra.mxu0 %v301
    %552 = vmatpush.msra.mxu0 %v299
    %553 = vmatpush.msra.mxu0 %v297
    %554 = vmatpush.msra.mxu0 %v295
    %555 = vmatpush.msra.mxu0 %v293
    %556 = vmatpush.msra.mxu0 %v291
    %557 = vmatpush.msra.mxu0 %v289
    %558 = vmatmul.f32.gmra.mxu0 %v252
    %v559 = vpop.f32.mrf.mxu0
    %v560 = vadd.f32 %v540, %v559
    %561 = vdwg.mxu0
    %562 = vmatpush.msra.mxu0 %v351
    %563 = vmatpush.msra.mxu0 %v349
    %564 = vmatpush.msra.mxu0 %v347
    %565 = vmatpush.msra.mxu0 %v345
    %566 = vmatpush.msra.mxu0 %v343
    %567 = vmatpush.msra.mxu0 %v341
    %568 = vmatpush.msra.mxu0 %v339
    %569 = vmatpush.msra.mxu0 %v337
    %570 = vmatpush.msra.mxu0 %v335
    %571 = vmatpush.msra.mxu0 %v333
    %572 = vmatpush.msra.mxu0 %v331
    %573 = vmatpush.msra.mxu0 %v329
    %574 = vmatpush.msra.mxu0 %v327
    %575 = vmatpush.msra.mxu0 %v325
    %576 = vmatpush.msra.mxu0 %v323
    %577 = vmatpush.msra.mxu0 %v321
    %578 = vmatmul.f32.gmra.mxu0 %v253
    %v579 = vpop.f32.mrf.mxu0
    %v580 = vadd.f32 %v560, %v579
    %581 = vdwg.mxu0
    %582 = vmatpush.msra.mxu0 %v383
    %583 = vmatpush.msra.mxu0 %v381
    %584 = vmatpush.msra.mxu0 %v379
    %585 = vmatpush.msra.mxu0 %v377
    %586 = vmatpush.msra.mxu0 %v375
    %587 = vmatpush.msra.mxu0 %v373
    %588 = vmatpush.msra.mxu0 %v371
    %589 = vmatpush.msra.mxu0 %v369
    %590 = vmatpush.msra.mxu0 %v367
    %591 = vmatpush.msra.mxu0 %v365
    %592 = vmatpush.msra.mxu0 %v363
    %593 = vmatpush.msra.mxu0 %v361
    %594 = vmatpush.msra.mxu0 %v359
    %595 = vmatpush.msra.mxu0 %v357
    %596 = vmatpush.msra.mxu0 %v355
    %597 = vmatpush.msra.mxu0 %v353
    %598 = vmatmul.f32.gmra.mxu0 %v254
    %v599 = vpop.f32.mrf.mxu0
    %v600 = vadd.f32 %v580, %v599
    %601 = vdwg.mxu0
    %602 = vmatpush.msra.mxu0 %v415
    %603 = vmatpush.msra.mxu0 %v413
    %604 = vmatpush.msra.mxu0 %v411
    %605 = vmatpush.msra.mxu0 %v409
    %606 = vmatpush.msra.mxu0 %v407
    %607 = vmatpush.msra.mxu0 %v405
    %608 = vmatpush.msra.mxu0 %v403
    %609 = vmatpush.msra.mxu0 %v401
    %610 = vmatpush.msra.mxu0 %v399
    %611 = vmatpush.msra.mxu0 %v397
    %612 = vmatpush.msra.mxu0 %v395
    %613 = vmatpush.msra.mxu0 %v393
    %614 = vmatpush.msra.mxu0 %v391
    %615 = vmatpush.msra.mxu0 %v389
    %616 = vmatpush.msra.mxu0 %v387
    %617 = vmatpush.msra.mxu0 %v385
    %618 = vmatmul.f32.gmra.mxu0 %v255
    %v619 = vpop.f32.mrf.mxu0
    %v620 = vadd.f32 %v600, %v619
    %621 = vdwg.mxu0
    %v622 = vmax.f32 %v520, 0.0
    %v623 = vmax.f32 %v620, 0.0
    %v624 = vld [vmem:[%s5] sm:$0xff]
    %v625 = vld [vmem:[%s5 + $0x8] sm:$0xff]
    %v626 = vld [vmem:[%s5 + $0x10] sm:$0xff]
    %v627 = vld [vmem:[%s5 + $0x18] sm:$0xff]
    %v628 = vld [vmem:[%s5 + $0x20] sm:$0xff]
    %v629 = vld [vmem:[%s5 + $0x28] sm:$0xff]
    %v630 = vld [vmem:[%s5 + $0x30] sm:$0xff]
    %v631 = vld [vmem:[%s5 + $0x38] sm:$0xff]
    %v632 = vld [vmem:[%s5 + $0x40] sm:$0xff]
    %v633 = vld [vmem:[%s5 + $0x48] sm:$0xff]
    %v634 = vld [vmem:[%s5 + $0x50] sm:$0xff]
    %v635 = vld [vmem:[%s5 + $0x58] sm:$0xff]
    %v636 = vld [vmem:[%s5 + $0x60] sm:$0xff]
    %v637 = vld [vmem:[%s5 + $0x68] sm:$0xff]
    %v638 = vld [vmem:[%s5 + $0x70] sm:$0xff]
    %v639 = vld [vmem:[%s5 + $0x78] sm:$0xff]
    %v640 = vld [vmem:[%s5 + $0x80] sm:$0xff]
    %v641 = vld [vmem:[%s5 + $0x88] sm:$0xff]
    %v642 = vld [vmem:[%s5 + $0x90] sm:$0xff]
    %v643 = vld [vmem:[%s5 + $0x98] sm:$0xff]
    %v644 = vld [vmem:[%s5 + $0xa0] sm:$0xff]
    %v645 = vld [vmem:[%s5 + $0xa8] sm:$0xff]
    %v646 = vld [vmem:[%s5 + $0xb0] sm:$0xff]
    %v647 = vld [vmem:[%s5 + $0xb8] sm:$0xff]
    %v648 = vld [vmem:[%s5 + $0xc0] sm:$0xff]
    %v649 = vld [vmem:[%s5 + $0xc8] sm:$0xff]
    %v650 = vld [vmem:[%s5 + $0xd0] sm:$0xff]
    %v651 = vld [vmem:[%s5 + $0xd8] sm:$0xff]
    %v652 = vld [vmem:[%s5 + $0xe0] sm:$0xff]
    %v653 = vld [vmem:[%s5 + $0xe8] sm:$0xff]
    %v654 = vld [vmem:[%s5 + $0xf0] sm:$0xff]
    %v655 = vld [vmem:[%s5 + $0xf8] sm:$0xff]
    %v656 = vld [vmem:[%s6] sm:$0x1]
    %v658 = vperm.slane %v656, 0
    %660 = vmatpush.msra.mxu0 %v639
    %661 = vmatpush.msra.mxu0 %v638
    %662 = vmatpush.msra.mxu0 %v637
    %663 = vmatpush.msra.mxu0 %v636
    %664 = vmatpush.msra.mxu0 %v635
    %665 = vmatpush.msra.mxu0 %v634
    %666 = vmatpush.msra.mxu0 %v633
    %667 = vmatpush.msra.mxu0 %v632
    %668 = vmatpush.msra.mxu0 %v631
    %669 = vmatpush.msra.mxu0 %v630
    %670 = vmatpush.msra.mxu0 %v629
    %671 = vmatpush.msra.mxu0 %v628
    %672 = vmatpush.msra.mxu0 %v627
    %673 = vmatpush.msra.mxu0 %v626
    %674 = vmatpush.msra.mxu0 %v625
    %675 = vmatpush.msra.mxu0 %v624
    %676 = vmatmul.f32.gmra.mxu0 %v622
    %v677 = vpop.f32.mrf.mxu0
    %v678 = vadd.f32 %v658, %v677
    %679 = vdwg.mxu0
    %680 = vmatpush.msra.mxu0 %v655
    %681 = vmatpush.msra.mxu0 %v654
    %682 = vmatpush.msra.mxu0 %v653
    %683 = vmatpush.msra.mxu0 %v652
    %684 = vmatpush.msra.mxu0 %v651
    %685 = vmatpush.msra.mxu0 %v650
    %686 = vmatpush.msra.mxu0 %v649
    %687 = vmatpush.msra.mxu0 %v648
    %688 = vmatpush.msra.mxu0 %v647
    %689 = vmatpush.msra.mxu0 %v646
    %690 = vmatpush.msra.mxu0 %v645
    %691 = vmatpush.msra.mxu0 %v644
    %692 = vmatpush.msra.mxu0 %v643
    %693 = vmatpush.msra.mxu0 %v642
    %694 = vmatpush.msra.mxu0 %v641
    %695 = vmatpush.msra.mxu0 %v640
    %696 = vmatmul.f32.gmra.mxu0 %v623
    %v697 = vpop.f32.mrf.mxu0
    %v698 = vadd.f32 %v678, %v697
    %699 = vdwg.mxu0
    %vm700 = vcmask 523264
    %701 = vst.msk [vmem:[#allocation6] sm:$0xff] %vm700, %v698
    // Predicated region
    $region38: #{qnetwork_forward.1} parent=1 // pred_check
      _
    $region39: #{qnetwork_forward.1} parent=1 // pred_check_branch
      %703 = sbr.rel (0) target = $region41
    $region40: #{qnetwork_forward.1} parent=1 // pred_region
      // Predicated region
      $region42: #{qnetwork_forward.1} parent=40 // pred_check
        _
      $region43: #{qnetwork_forward.1} parent=40 // pred_check_branch
        %705 = sbr.rel (0) target = $region45
      $region44: #{qnetwork_forward.1} parent=40 // pred_region
        // Predicated region
        $region46: #{qnetwork_forward.1} parent=44 // pred_check
          _
        $region47: #{qnetwork_forward.1} parent=44 // pred_check_branch
          %707 = sbr.rel target = $region49
        $region48: #{qnetwork_forward.1} parent=44 // pred_region
          // Predicated region
          $region61: #{qnetwork_forward.1} parent=48 // pred_check
            _
          $region62: #{qnetwork_forward.1} parent=48 // pred_check_branch
            %723 = sbr.rel (0) target = $region64
          $region63: #{qnetwork_forward.1} parent=48 // pred_region
            %s725 = ssub.s32 2, 1
            loop: start=0, step=1, limit=1
            $region65: #{qnetwork_forward.1} parent=63 // loop_pre_header
              _
            $region66: #{qnetwork_forward.1} parent=63 // loop_header
              %s727 = sphi 0, %s731
              %p728 = scmp.ge.s32.totalorder %s727, 1
              %s732 = sphi [#allocation6], [#allocation6]
              %s733 = sphi %s7, %s7
            $region67: #{qnetwork_forward.1} parent=63 // loop_header_branch
              %730 = sbr.rel (%p728) target = $region71
            $region68: #{qnetwork_forward.1} parent=63 // loop_body
              %v734 = vld [vmem:[%s732] sm:%s725]
              %735 = vst [vmem:[%s733] sm:%s725] %v734
            $region69: #{qnetwork_forward.1} parent=63 // loop_footer
              %s731 = sadd.s32 1, %s727
            $region70: #{qnetwork_forward.1} parent=63 // loop_footer_branch
              %726 = sbr.rel target = $region66
            $region71: #{qnetwork_forward.1} parent=63 // loop_exit
              _
          $region64: #{qnetwork_forward.1} parent=48 // pred_fallthru
            _
        $region49: #{qnetwork_forward.1} parent=44 // pred_fallthru
          _
        // Predicated region
        $region50: #{qnetwork_forward.1} parent=44 // pred_check
          _
        $region51: #{qnetwork_forward.1} parent=44 // pred_check_branch
          %709 = sbr.rel (0) target = $region53
        $region52: #{qnetwork_forward.1} parent=44 // pred_region
          %s711 = ssub.s32 2, 1
          loop: start=0, step=1, limit=1
          $region54: #{qnetwork_forward.1} parent=52 // loop_pre_header
            _
          $region55: #{qnetwork_forward.1} parent=52 // loop_header
            %s713 = sphi 0, %s717
            %p714 = scmp.ge.s32.totalorder %s713, 1
            %s718 = sphi [#allocation6], [#allocation6]
            %s719 = sphi %s7, %s7
          $region56: #{qnetwork_forward.1} parent=52 // loop_header_branch
            %716 = sbr.rel (%p714) target = $region60
          $region57: #{qnetwork_forward.1} parent=52 // loop_body
            %v720 = vld [vmem:[%s718] sm:%s711]
            %721 = vst [vmem:[%s719] sm:%s711] %v720
          $region58: #{qnetwork_forward.1} parent=52 // loop_footer
            %s717 = sadd.s32 1, %s713
          $region59: #{qnetwork_forward.1} parent=52 // loop_footer_branch
            %712 = sbr.rel target = $region55
          $region60: #{qnetwork_forward.1} parent=52 // loop_exit
            _
        $region53: #{qnetwork_forward.1} parent=44 // pred_fallthru
          _
      $region45: #{qnetwork_forward.1} parent=40 // pred_fallthru
        _
      %736 = vnop
    $region41: #{qnetwork_forward.1} parent=1 // pred_fallthru
      _
    // Predicated region
    $region72: #{qnetwork_forward.1} parent=1 // pred_check
      _
    $region73: #{qnetwork_forward.1} parent=1 // pred_check_branch
      %738 = sbr.rel (0) target = $region75
    $region74: #{qnetwork_forward.1} parent=1 // pred_region
      _
    $region75: #{qnetwork_forward.1} parent=1 // pred_fallthru
      _
    %739 = vsyncpa [#allocation3], 1
    %740 = vsyncpa [#allocation5], 1

</llo_original>
